<compile_context>
chip_gen: v7x
topology: tpu7x:2x2x1
jax: 0.10.0
libtpu: 0.0.40
codegen_flags: <defaults>
</compile_context>

<pallas_src>
import functools

import jax
import jax.numpy as jnp
from jax.experimental import pallas as pl
from jax.experimental.pallas import tpu as pltpu

_LANE = 128
_BF16_SUBLANE = 16          # bf16 packs 16 rows per vreg sublane group

try:  # one-time, trace-time hardware query; v7x-safe fallback if unavailable
    _VMEM_CAP = int(pltpu.get_tpu_info().vmem_capacity_bytes)
except Exception:  # pragma: no cover
    _VMEM_CAP = 64 * 1024 * 1024


def _round_up(n, m):
    return ((n + m - 1) // m) * m


# ----------------------------------------------------------------------------- kernel
def _mlp_kernel(x_ref, w1_ref, b1_ref, w2_ref, b2_ref, w3_ref, o_ref):
    x = x_ref[...]                                                         # (TB, Ip)  bf16
    # Layer 1: MXU matmul, f32 accumulate, f32 bias add; tanh on bf16 (EUP).
    h = jnp.dot(x, w1_ref[...], preferred_element_type=jnp.float32) + b1_ref[...]
    h = jnp.tanh(h.astype(w2_ref.dtype))                                   # bf16 for next dot
    # Layer 2
    h = jnp.dot(h, w2_ref[...], preferred_element_type=jnp.float32) + b2_ref[...]
    h = jnp.tanh(h.astype(w3_ref.dtype))
    # Layer 3 (no bias) — lane-dense (padded) output store.
    o_ref[...] = jnp.dot(h, w3_ref[...], preferred_element_type=jnp.float32).astype(o_ref.dtype)


# ----------------------------------------------------------------------------- params
def pack_params(params, matmul_dtype=jnp.bfloat16):
    """One-time repack of PyTorch-layout params into kernel layout.

    Transposes to [in, out], zero-pads ALL feature dims (input, hidden, output) to 128-lane
    multiples and casts matmul operands to bf16.  Returns (packed_dict, (I, H, O)).
    """
    w1, b1, w2, b2, w3 = (params[k] for k in ("w1", "b1", "w2", "b2", "w3"))
    H, I = w1.shape
    O = w3.shape[0]
    Ip, Hp, Op = _round_up(I, _LANE), _round_up(H, _LANE), _round_up(O, _LANE)

    def pad2(a, rows, cols):
        return jnp.pad(a, ((0, rows - a.shape[0]), (0, cols - a.shape[1])))

    packed = {
        "w1": pad2(w1.T, Ip, Hp).astype(matmul_dtype),                     # [Ip, Hp]
        "b1": jnp.pad(b1, (0, Hp - H))[None, :].astype(jnp.float32),       # [1 , Hp]
        "w2": pad2(w2.T, Hp, Hp).astype(matmul_dtype),                     # [Hp, Hp]
        "b2": jnp.pad(b2, (0, Hp - H))[None, :].astype(jnp.float32),       # [1 , Hp]
        "w3": pad2(w3.T, Hp, Op).astype(matmul_dtype),                     # [Hp, Op]
    }
    return packed, (I, H, O)


# ----------------------------------------------------------------------------- Buffered(1) probe
_SINGLE_BUFFER_OK = None


def _single_buffer_supported():
    """One-time, compile-only probe for pipeline_mode=pl.Buffered(1) support (cached)."""
    global _SINGLE_BUFFER_OK
    if _SINGLE_BUFFER_OK is None:
        def _copy(x_ref, o_ref):
            o_ref[...] = x_ref[...]
        try:
            probe = pl.pallas_call(
                _copy,
                out_shape=jax.ShapeDtypeStruct((8, 128), jnp.float32),
                grid=(1,),
                in_specs=[pl.BlockSpec((8, 128), lambda i: (0, 0),
                                       pipeline_mode=pl.Buffered(1))],
                out_specs=pl.BlockSpec((8, 128), lambda i: (0, 0)),
            )
            jax.jit(probe).lower(jax.ShapeDtypeStruct((8, 128), jnp.float32)).compile()
            _SINGLE_BUFFER_OK = True
        except Exception:
            _SINGLE_BUFFER_OK = False
    return _SINGLE_BUFFER_OK


# ----------------------------------------------------------------------------- tiling
def _choose_batch_tiling(B, max_tile):
    """Pick (tb, Bp): batch tile and padded batch.

    * batch padded only to the bf16 sublane multiple (16), plus <= 16*(grid-1) extra rows so the
      grid divides exactly (no masked partial stores),
    * grid length >= 2 and even when the batch allows (both v7x TensorCores get work),
    * per-step tile capped at max_tile rows.
    """
    Bp = _round_up(B, _BF16_SUBLANE)
    if Bp <= _BF16_SUBLANE:
        return Bp, Bp
    n_blocks = max(2, -(-Bp // max_tile))
    if n_blocks % 2:
        n_blocks += 1
    tb = _round_up(-(-Bp // n_blocks), _BF16_SUBLANE)
    Bp = _round_up(Bp, tb)
    return tb, Bp


# ----------------------------------------------------------------------------- forward (jitted)
@functools.partial(jax.jit,
                   static_argnames=("out_dim", "max_batch_tile",
                                    "single_buffer_weights", "out_dtype"))
def _mlp_forward_impl(x, w1, b1, w2, b2, w3, *, out_dim, max_batch_tile,
                      single_buffer_weights, out_dtype):
    B, I = x.shape
    Ip, Hp = w1.shape
    Op = w3.shape[1]
    assert I <= Ip, "input feature dim larger than packed weight"

    tb, Bp = _choose_batch_tiling(B, max_batch_tile)

    xk = x.astype(w1.dtype)
    if (Bp, Ip) != (B, I):
        xk = jnp.pad(xk, ((0, Bp - B), (0, Ip - I)))      # lane-dense, 16-row-aligned x

    grid = (Bp // tb,)

    # VMEM budget: weights (single- or double-buffered) + double-buffered x/out tiles.
    out_itemsize = jnp.dtype(out_dtype).itemsize
    weight_bytes = sum(a.size * a.dtype.itemsize for a in (w1, b1, w2, b2, w3))
    weight_bufs = 1 if single_buffer_weights else 2
    tile_bytes = 2 * tb * Ip * xk.dtype.itemsize + 2 * tb * Op * out_itemsize
    working = weight_bufs * weight_bytes + tile_bytes
    vmem_limit = int(min(0.75 * _VMEM_CAP, max(32 * 1024 * 1024, 2 * working)))

    flops = 2 * Bp * (Ip * Hp + Hp * Hp + Hp * Op)
    transcendentals = 2 * Bp * Hp
    bytes_accessed = (xk.size * xk.dtype.itemsize + weight_bytes + Bp * Op * out_itemsize)

    def const_spec(arr):
        nd = arr.ndim
        idx = lambda i, _nd=nd: (0,) * _nd
        if single_buffer_weights:
            # Grid-invariant operand: a single VMEM buffer suffices (halves weight VMEM).
            return pl.BlockSpec(arr.shape, idx, pipeline_mode=pl.Buffered(1))
        return pl.BlockSpec(arr.shape, idx)

    out_p = pl.pallas_call(
        _mlp_kernel,
        out_shape=jax.ShapeDtypeStruct((Bp, Op), out_dtype),
        grid=grid,
        in_specs=[
            pl.BlockSpec((tb, Ip), lambda i: (i, 0)),                      # x: tiled over batch
            const_spec(w1), const_spec(b1),
            const_spec(w2), const_spec(b2),
            const_spec(w3),
        ],
        out_specs=pl.BlockSpec((tb, Op), lambda i: (i, 0)),
        compiler_params=pltpu.CompilerParams(
            dimension_semantics=("parallel",),
            vmem_limit_bytes=vmem_limit,
        ),
        cost_estimate=pl.CostEstimate(
            flops=flops,
            transcendentals=transcendentals,
            bytes_accessed=bytes_accessed,
        ),
    )(xk, w1, b1, w2, b2, w3)

    return out_p[:B, :out_dim]


def mlp_forward(x, packed, out_dim, *, max_batch_tile=512, out_dtype=jnp.float32):
    """x: [B, input_dim] f32.  packed: output of pack_params.  Returns [B, out_dim] (out_dtype)."""
    return _mlp_forward_impl(
        x, packed["w1"], packed["b1"], packed["w2"], packed["b2"], packed["w3"],
        out_dim=int(out_dim),
        max_batch_tile=int(max_batch_tile),
        single_buffer_weights=_single_buffer_supported(),
        out_dtype=jnp.dtype(out_dtype),
    )


# ----------------------------------------------------------------------------- init / reference
def _orthogonal(key, shape, dtype=jnp.float32):
    """Deterministic orthogonal init (matches torch.nn.init.orthogonal_ semantics)."""
    rows, cols = shape
    flat = jax.random.normal(key, (max(rows, cols), min(rows, cols)), dtype)
    q, r = jnp.linalg.qr(flat)
    s = jnp.sign(jnp.diagonal(r))
    s = jnp.where(s == 0, 1.0, s)
    q = q * s[None, :]
    if rows < cols:
        q = q.T
    return q[:rows, :cols].astype(dtype)


def init_mlp_params(key, input_dim, hidden_dim, output_dim):
    k1, k2, k3, kb1, kb2 = jax.random.split(key, 5)
    w1 = _orthogonal(k1, (hidden_dim, input_dim))
    w2 = _orthogonal(k2, (hidden_dim, hidden_dim))
    w3 = _orthogonal(k3, (output_dim, hidden_dim))
    # PyTorch Linear default bias init: U(-1/sqrt(fan_in), 1/sqrt(fan_in))
    b1 = jax.random.uniform(kb1, (hidden_dim,),
                            minval=-1.0 / jnp.sqrt(input_dim), maxval=1.0 / jnp.sqrt(input_dim))
    b2 = jax.random.uniform(kb2, (hidden_dim,),
                            minval=-1.0 / jnp.sqrt(hidden_dim), maxval=1.0 / jnp.sqrt(hidden_dim))
    return {"w1": w1, "b1": b1, "w2": w2, "b2": b2, "w3": w3}


def mlp_reference(x, params):
    h = jnp.tanh(x @ params["w1"].T + params["b1"])
    h = jnp.tanh(h @ params["w2"].T + params["b2"])
    return h @ params["w3"].T


# ----------------------------------------------------------------------------- demo
if __name__ == "__main__":
    input_dim, hidden_dim, output_dim = 4, 32, 2
    batch = 8

    key = jax.random.PRNGKey(0)
    kx, kp = jax.random.split(key)
    x = jax.random.normal(kx, (batch, input_dim), jnp.float32)
    params = init_mlp_params(kp, input_dim, hidden_dim, output_dim)

    packed, (I, H, O) = pack_params(params)          # one-time transpose / pad / bf16 cast
    out = mlp_forward(x, packed, out_dim=O)          # jitted; probe resolved once per process
    out = jax.block_until_ready(out)

    ref = mlp_reference(x, params)                   # pure f32 reference
    assert out.shape == (batch, output_dim)
    # bf16 matmul inputs + bf16 tanh (f32 accumulation) vs pure-f32 reference: bf16-level error.
    assert jnp.allclose(out, ref, atol=3e-2, rtol=3e-2), "mismatch vs reference"

    print("KERNEL_OK")
</pallas_src>

<mosaic_0001>
module attributes {stable_mosaic.version = 11 : i64} {
  func.func @_mlp_kernel(%arg0: i32, %arg1: memref<16x128xbf16, #tpu.memory_space<vmem>>, %arg2: memref<128x128xbf16, #tpu.memory_space<vmem>>, %arg3: memref<1x128xf32, #tpu.memory_space<vmem>>, %arg4: memref<128x128xbf16, #tpu.memory_space<vmem>>, %arg5: memref<1x128xf32, #tpu.memory_space<vmem>>, %arg6: memref<128x128xbf16, #tpu.memory_space<vmem>>, %arg7: memref<16x128xf32, #tpu.memory_space<vmem>>) attributes {dimension_semantics = [#tpu.dimension_semantics<parallel>], iteration_bounds = array<i64: 1>, scalar_prefetch = 0 : i64, scratch_operands = 0 : i64, tpu.core_type = #tpu.core_type<tc>, window_params = [{transform_indices = @transform_0, window_bounds = array<i64: 16, 128>}, {pipeline_mode = #tpu.pipeline_mode<synchronous>, transform_indices = @transform_1, window_bounds = array<i64: 128, 128>}, {pipeline_mode = #tpu.pipeline_mode<synchronous>, transform_indices = @transform_2, window_bounds = array<i64: 1, 128>}, {pipeline_mode = #tpu.pipeline_mode<synchronous>, transform_indices = @transform_3, window_bounds = array<i64: 128, 128>}, {pipeline_mode = #tpu.pipeline_mode<synchronous>, transform_indices = @transform_4, window_bounds = array<i64: 1, 128>}, {pipeline_mode = #tpu.pipeline_mode<synchronous>, transform_indices = @transform_5, window_bounds = array<i64: 128, 128>}, {transform_indices = @transform_6, window_bounds = array<i64: 16, 128>}]} {
    %c0 = arith.constant 0 : index
    %c0_0 = arith.constant 0 : index
    %0 = vector.load %arg1[%c0, %c0_0] : memref<16x128xbf16, #tpu.memory_space<vmem>>, vector<16x128xbf16>
    %c0_1 = arith.constant 0 : index
    %c0_2 = arith.constant 0 : index
    %1 = vector.load %arg2[%c0_1, %c0_2] : memref<128x128xbf16, #tpu.memory_space<vmem>>, vector<128x128xbf16>
    %cst = arith.constant dense<0.000000e+00> : vector<16x128xf32>
    %2 = tpu.matmul %0, %1, %cst {dimension_numbers = #tpu.dot_dimension_numbers<[1], [0], [0], [1], [0, 0, 1, 1], [], []>} : vector<16x128xbf16>, vector<128x128xbf16>, vector<16x128xf32> -> vector<16x128xf32>
    %c0_3 = arith.constant 0 : index
    %c0_4 = arith.constant 0 : index
    %3 = vector.load %arg3[%c0_3, %c0_4] : memref<1x128xf32, #tpu.memory_space<vmem>>, vector<1x128xf32>
    %4 = vector.broadcast %3 : vector<1x128xf32> to vector<16x128xf32>
    %5 = arith.addf %2, %4 : vector<16x128xf32>
    %6 = arith.truncf %5 : vector<16x128xf32> to vector<16x128xbf16>
    %7 = math.tanh %6 : vector<16x128xbf16>
    %c0_5 = arith.constant 0 : index
    %c0_6 = arith.constant 0 : index
    %8 = vector.load %arg4[%c0_5, %c0_6] : memref<128x128xbf16, #tpu.memory_space<vmem>>, vector<128x128xbf16>
    %cst_7 = arith.constant dense<0.000000e+00> : vector<16x128xf32>
    %9 = tpu.matmul %7, %8, %cst_7 {dimension_numbers = #tpu.dot_dimension_numbers<[1], [0], [0], [1], [0, 0, 1, 1], [], []>} : vector<16x128xbf16>, vector<128x128xbf16>, vector<16x128xf32> -> vector<16x128xf32>
    %c0_8 = arith.constant 0 : index
    %c0_9 = arith.constant 0 : index
    %10 = vector.load %arg5[%c0_8, %c0_9] : memref<1x128xf32, #tpu.memory_space<vmem>>, vector<1x128xf32>
    %11 = vector.broadcast %10 : vector<1x128xf32> to vector<16x128xf32>
    %12 = arith.addf %9, %11 : vector<16x128xf32>
    %13 = arith.truncf %12 : vector<16x128xf32> to vector<16x128xbf16>
    %14 = math.tanh %13 : vector<16x128xbf16>
    %c0_10 = arith.constant 0 : index
    %c0_11 = arith.constant 0 : index
    %15 = vector.load %arg6[%c0_10, %c0_11] : memref<128x128xbf16, #tpu.memory_space<vmem>>, vector<128x128xbf16>
    %cst_12 = arith.constant dense<0.000000e+00> : vector<16x128xf32>
    %16 = tpu.matmul %14, %15, %cst_12 {dimension_numbers = #tpu.dot_dimension_numbers<[1], [0], [0], [1], [0, 0, 1, 1], [], []>} : vector<16x128xbf16>, vector<128x128xbf16>, vector<16x128xf32> -> vector<16x128xf32>
    %c0_13 = arith.constant 0 : index
    %c0_14 = arith.constant 0 : index
    %17 = vector.load %arg7[%c0_13, %c0_14] : memref<16x128xf32, #tpu.memory_space<vmem>>, vector<16x128xf32>
    tpu.vector_store %arg7[%c0_13, %c0_14], %16 {strides = array<i32>} : memref<16x128xf32, #tpu.memory_space<vmem>>, vector<16x128xf32>,
    return
  }
  func.func @transform_0(%arg0: i32) -> (i32, i32) {
    %c0_i32 = arith.constant 0 : i32
    %c0_i32_0 = arith.constant 0 : i32
    return %arg0, %c0_i32 : i32, i32
  }
  func.func @transform_1(%arg0: i32) -> (i32, i32) {
    %c0_i32 = arith.constant 0 : i32
    %c0_i32_0 = arith.constant 0 : i32
    %c0_i32_1 = arith.constant 0 : i32
    return %c0_i32, %c0_i32_0 : i32, i32
  }
  func.func @transform_2(%arg0: i32) -> (i32, i32) {
    %c0_i32 = arith.constant 0 : i32
    %c0_i32_0 = arith.constant 0 : i32
    %c0_i32_1 = arith.constant 0 : i32
    return %c0_i32, %c0_i32_0 : i32, i32
  }
  func.func @transform_3(%arg0: i32) -> (i32, i32) {
    %c0_i32 = arith.constant 0 : i32
    %c0_i32_0 = arith.constant 0 : i32
    %c0_i32_1 = arith.constant 0 : i32
    return %c0_i32, %c0_i32_0 : i32, i32
  }
  func.func @transform_4(%arg0: i32) -> (i32, i32) {
    %c0_i32 = arith.constant 0 : i32
    %c0_i32_0 = arith.constant 0 : i32
    %c0_i32_1 = arith.constant 0 : i32
    return %c0_i32, %c0_i32_0 : i32, i32
  }
  func.func @transform_5(%arg0: i32) -> (i32, i32) {
    %c0_i32 = arith.constant 0 : i32
    %c0_i32_0 = arith.constant 0 : i32
    %c0_i32_1 = arith.constant 0 : i32
    return %c0_i32, %c0_i32_0 : i32, i32
  }
  func.func @transform_6(%arg0: i32) -> (i32, i32) {
    %c0_i32 = arith.constant 0 : i32
    %c0_i32_0 = arith.constant 0 : i32
    return %arg0, %c0_i32 : i32, i32
  }
}

</mosaic_0001>

<llo_original>
// kernel: _mlp_forward_impl.1
$region0: #{_mlp_forward_impl.1}
  #allocation0 [shape = 'u32[]', space=smem, size = 0x4, offset = 0x4, fixed_abs, tag = 'smem constant byte address 0x4 - core index']
  #allocation1 [shape = 'u32[144,128]{1,0:T(1,128)}', space=vmem, size = 0x12000, scoped, tag = 'internal scratch']
  %s0 = inlined_call_operand.vmem [shape: bf16[16,128], index: 0, kind: input, shape index: {}]
  %s1 = inlined_call_operand.hbm [shape: bf16[128,128], index: 1, kind: input, shape index: {}]
  %s2 = inlined_call_operand.vmem [shape: f32[1,128], index: 2, kind: input, shape index: {}]
  %s3 = inlined_call_operand.hbm [shape: bf16[128,128], index: 3, kind: input, shape index: {}]
  %s4 = inlined_call_operand.vmem [shape: f32[1,128], index: 4, kind: input, shape index: {}]
  %s5 = inlined_call_operand.hbm [shape: bf16[128,128], index: 5, kind: input, shape index: {}]
  %s6 = inlined_call_operand.vmem [shape: f32[16,128], index: 6, kind: output, shape index: {}]
  %s7 = sld [smem:[#allocation0]]
  $region46: #{_mlp_forward_impl.1} parent=0
    _
  %s9 = ssub.s32 1, %s7
  %s10 = scalar_select 0, %s9, %s7
  $region1: #{_mlp_forward_impl.1} parent=0
    #allocation2 [shape = 'u8[32768]{0}', space=vmem, size = 0x8000, scoped, tag = 'input window, operand 1, single buffered']
    #allocation3 [shape = 's32[1]{0}', space=sflag, size = 0x4, scoped, tag = 'scoped memory for _mlp_forward_impl.1']
    #allocation4 [shape = 'u8[32768]{0}', space=vmem, size = 0x8000, scoped, tag = 'input window, operand 3, single buffered']
    #allocation5 [shape = 's32[1]{0}', space=sflag, size = 0x4, scoped, tag = 'scoped memory for _mlp_forward_impl.1']
    #allocation6 [shape = 'u8[32768]{0}', space=vmem, size = 0x8000, scoped, tag = 'input window, operand 5, single buffered']
    %11 = vsyncpa [#allocation3], 0
    %12 = vsyncpa [#allocation5], 0
    // Predicated region
    $region2: #{_mlp_forward_impl.1} parent=1 // pred_check
      _
    $region3: #{_mlp_forward_impl.1} parent=1 // pred_check_branch
      %14 = sbr.rel (0) target = $region5
    $region4: #{_mlp_forward_impl.1} parent=1 // pred_region
      _
    $region5: #{_mlp_forward_impl.1} parent=1 // pred_fallthru
      _
    // Predicated region
    $region6: #{_mlp_forward_impl.1} parent=1 // pred_check
      _
    $region7: #{_mlp_forward_impl.1} parent=1 // pred_check_branch
      %16 = sbr.rel (0) target = $region9
    $region8: #{_mlp_forward_impl.1} parent=1 // pred_region
      %s18 = ssub.s32 1024, 1024
      %19 = vsyncadd [#allocation3], %s18
      %s20 = sshll.u32 [#allocation2], 4
      %s21 = int_to_ptr.vmem [resolvable:$true] %s20
      %26 = dma.hbm_to_vmem [thread:$0]  %s1, 1024, %s21, [#allocation3], 64, 64, 4
    $region9: #{_mlp_forward_impl.1} parent=1 // pred_fallthru
      _
    // Predicated region
    $region10: #{_mlp_forward_impl.1} parent=1 // pred_check
      _
    $region11: #{_mlp_forward_impl.1} parent=1 // pred_check_branch
      %28 = sbr.rel (0) target = $region13
    $region12: #{_mlp_forward_impl.1} parent=1 // pred_region
      _
    $region13: #{_mlp_forward_impl.1} parent=1 // pred_fallthru
      _
    // Predicated region
    $region14: #{_mlp_forward_impl.1} parent=1 // pred_check
      _
    $region15: #{_mlp_forward_impl.1} parent=1 // pred_check_branch
      %30 = sbr.rel (0) target = $region17
    $region16: #{_mlp_forward_impl.1} parent=1 // pred_region
      %s32 = ssub.s32 1024, 1024
      %33 = vsyncadd [#allocation5], %s32
      %s34 = sshll.u32 [#allocation4], 4
      %s35 = int_to_ptr.vmem [resolvable:$true] %s34
      %40 = dma.hbm_to_vmem [thread:$0]  %s3, 1024, %s35, [#allocation5], 64, 64, 4
    $region17: #{_mlp_forward_impl.1} parent=1 // pred_fallthru
      _
    // Predicated region
    $region18: #{_mlp_forward_impl.1} parent=1 // pred_check
      _
    $region19: #{_mlp_forward_impl.1} parent=1 // pred_check_branch
      %42 = sbr.rel (0) target = $region21
    $region20: #{_mlp_forward_impl.1} parent=1 // pred_region
      _
    $region21: #{_mlp_forward_impl.1} parent=1 // pred_fallthru
      _
    // Predicated region
    $region22: #{_mlp_forward_impl.1} parent=1 // pred_check
      _
    $region23: #{_mlp_forward_impl.1} parent=1 // pred_check_branch
      %44 = sbr.rel (0) target = $region25
    $region24: #{_mlp_forward_impl.1} parent=1 // pred_region
      %s46 = ssub.s32 1024, 1024
      %47 = vsyncadd [#allocation5], %s46
      %s48 = sshll.u32 [#allocation6], 4
      %s49 = int_to_ptr.vmem [resolvable:$true] %s48
      %54 = dma.hbm_to_vmem [thread:$0]  %s5, 1024, %s49, [#allocation5], 64, 64, 4
    $region25: #{_mlp_forward_impl.1} parent=1 // pred_fallthru
      _
    // Predicated region
    $region26: #{_mlp_forward_impl.1} parent=1 // pred_check
      _
    $region27: #{_mlp_forward_impl.1} parent=1 // pred_check_branch
      %56 = sbr.rel (0) target = $region29
    $region28: #{_mlp_forward_impl.1} parent=1 // pred_region
      %57 = dma.done [#allocation3], 1024
    $region29: #{_mlp_forward_impl.1} parent=1 // pred_fallthru
      _
    // Predicated region
    $region30: #{_mlp_forward_impl.1} parent=1 // pred_check
      _
    $region31: #{_mlp_forward_impl.1} parent=1 // pred_check_branch
      %59 = sbr.rel (0) target = $region33
    $region32: #{_mlp_forward_impl.1} parent=1 // pred_region
      %60 = dma.done [#allocation5], 1024
    $region33: #{_mlp_forward_impl.1} parent=1 // pred_fallthru
      _
    // Predicated region
    $region34: #{_mlp_forward_impl.1} parent=1 // pred_check
      _
    $region35: #{_mlp_forward_impl.1} parent=1 // pred_check_branch
      %62 = sbr.rel (0) target = $region37
    $region36: #{_mlp_forward_impl.1} parent=1 // pred_region
      %63 = dma.done [#allocation5], 1024
    $region37: #{_mlp_forward_impl.1} parent=1 // pred_fallthru
      _
    %v65 = vld [vmem:[%s0] sm:$0xf]
    %v66 = vld [vmem:[%s0 + $0x4] sm:$0xf]
    %v67 = vld [vmem:[#allocation2] sm:$0xf]
    %v68 = vld [vmem:[#allocation2 + $0x4] sm:$0xf]
    %v69 = vld [vmem:[#allocation2 + $0x8] sm:$0xf]
    %v70 = vld [vmem:[#allocation2 + $0xc] sm:$0xf]
    %v71 = vld [vmem:[#allocation2 + $0x10] sm:$0xf]
    %v72 = vld [vmem:[#allocation2 + $0x14] sm:$0xf]
    %v73 = vld [vmem:[#allocation2 + $0x18] sm:$0xf]
    %v74 = vld [vmem:[#allocation2 + $0x1c] sm:$0xf]
    %v75 = vld [vmem:[#allocation2 + $0x20] sm:$0xf]
    %v76 = vld [vmem:[#allocation2 + $0x24] sm:$0xf]
    %v77 = vld [vmem:[#allocation2 + $0x28] sm:$0xf]
    %v78 = vld [vmem:[#allocation2 + $0x2c] sm:$0xf]
    %v79 = vld [vmem:[#allocation2 + $0x30] sm:$0xf]
    %v80 = vld [vmem:[#allocation2 + $0x34] sm:$0xf]
    %v81 = vld [vmem:[#allocation2 + $0x38] sm:$0xf]
    %v82 = vld [vmem:[#allocation2 + $0x3c] sm:$0xf]
    %v83 = vld [vmem:[%s2] sm:$0x1]
    %v85 = vlaneseq
    %v86 = vshrl.u32 %v85, 7
    %v87 = vsub.s32 0, %v86
    %v88 = vrot.slane %v83, %v87
    %v92 = vunpack.c.l.b16 %v65
    %v93 = vunpack.c.l.b16 %v66
    %v94 = vpack.c.b16 %v93, %v92
    %v112 = vunpack.c.l.b16 %v67
    %v113 = vunpack.c.l.b16 %v68
    %v114 = vunpack.c.l.b16 %v69
    %v115 = vunpack.c.l.b16 %v70
    %v116 = vunpack.c.l.b16 %v71
    %v117 = vunpack.c.l.b16 %v72
    %v118 = vunpack.c.l.b16 %v73
    %v119 = vunpack.c.l.b16 %v74
    %v120 = vunpack.c.l.b16 %v75
    %v121 = vunpack.c.l.b16 %v76
    %v122 = vunpack.c.l.b16 %v77
    %v123 = vunpack.c.l.b16 %v78
    %v124 = vunpack.c.l.b16 %v79
    %v125 = vunpack.c.l.b16 %v80
    %v126 = vunpack.c.l.b16 %v81
    %v127 = vunpack.c.l.b16 %v82
    %v128 = vpack.c.b16 %v113, %v112
    %v129 = vpack.c.b16 %v115, %v114
    %v130 = vpack.c.b16 %v117, %v116
    %v131 = vpack.c.b16 %v119, %v118
    %v132 = vpack.c.b16 %v121, %v120
    %v133 = vpack.c.b16 %v123, %v122
    %v134 = vpack.c.b16 %v125, %v124
    %v135 = vpack.c.b16 %v127, %v126
    %144 = vmatprep.subr.bf16.mxu0 0
    %145 = vmatpush1.bf16.msra.mxu0 %v128
    %146 = vmatprep.subr.bf16.mxu0 0
    %147 = vmatpush1.bf16.msra.mxu0 %v129
    %148 = vmatprep.subr.bf16.mxu0 0
    %149 = vmatpush1.bf16.msra.mxu0 %v130
    %150 = vmatprep.subr.bf16.mxu0 0
    %151 = vmatpush1.bf16.msra.mxu0 %v131
    %152 = vmatprep.subr.bf16.mxu0 0
    %153 = vmatpush1.bf16.msra.mxu0 %v132
    %154 = vmatprep.subr.bf16.mxu0 0
    %155 = vmatpush1.bf16.msra.mxu0 %v133
    %156 = vmatprep.subr.bf16.mxu0 0
    %157 = vmatpush1.bf16.msra.mxu0 %v134
    %158 = vmatprep.subr.bf16.mxu0 0
    %159 = vmatpush1.bf16.msra.mxu0 %v135
    %160 = vmatprep.subr.bf16.mxu0 0
    %161 = vmatpush1.bf16.msra.mxu0 0
    %162 = vmatprep.subr.bf16.mxu0 0
    %163 = vmatpush1.bf16.msra.mxu0 0
    %164 = vmatprep.subr.bf16.mxu0 0
    %165 = vmatpush1.bf16.msra.mxu0 0
    %166 = vmatprep.subr.bf16.mxu0 0
    %167 = vmatpush1.bf16.msra.mxu0 0
    %168 = vmatprep.subr.bf16.mxu0 0
    %169 = vmatpush1.bf16.msra.mxu0 0
    %170 = vmatprep.subr.bf16.mxu0 0
    %171 = vmatpush1.bf16.msra.mxu0 0
    %172 = vmatprep.subr.bf16.mxu0 0
    %173 = vmatpush1.bf16.msra.mxu0 0
    %174 = vmatprep.subr.bf16.mxu0 0
    %175 = vmatpush1.bf16.msra.mxu0 0
    %176 = vmatprep.mubr.bf16.mxu0 0
    %177 = vmatmul.mubr.bf16.gmra.mrb[0].mxu0 %v94
    %v178 = vpop.f32.mrb[0].mxu0
    %v179 = vadd.f32 %v88, %v178
    %v180 = vpop.f32.mrb[0].mxu0
    %v181 = vpop.f32.mrb[0].mxu0
    %v182 = vadd.f32 %v88, %v181
    %v183 = vpop.f32.mrb[0].mxu0
    %184 = vdwg.mxu0
    %v185 = vpack.c.bf16 %v182, %v179
    %v186 = vtanh.bf16.pop %v185
    %v187 = vld [vmem:[#allocation4] sm:$0xf]
    %v188 = vld [vmem:[#allocation4 + $0x4] sm:$0xf]
    %v189 = vld [vmem:[#allocation4 + $0x8] sm:$0xf]
    %v190 = vld [vmem:[#allocation4 + $0xc] sm:$0xf]
    %v191 = vld [vmem:[#allocation4 + $0x10] sm:$0xf]
    %v192 = vld [vmem:[#allocation4 + $0x14] sm:$0xf]
    %v193 = vld [vmem:[#allocation4 + $0x18] sm:$0xf]
    %v194 = vld [vmem:[#allocation4 + $0x1c] sm:$0xf]
    %v195 = vld [vmem:[#allocation4 + $0x20] sm:$0xf]
    %v196 = vld [vmem:[#allocation4 + $0x24] sm:$0xf]
    %v197 = vld [vmem:[#allocation4 + $0x28] sm:$0xf]
    %v198 = vld [vmem:[#allocation4 + $0x2c] sm:$0xf]
    %v199 = vld [vmem:[#allocation4 + $0x30] sm:$0xf]
    %v200 = vld [vmem:[#allocation4 + $0x34] sm:$0xf]
    %v201 = vld [vmem:[#allocation4 + $0x38] sm:$0xf]
    %v202 = vld [vmem:[#allocation4 + $0x3c] sm:$0xf]
    %v203 = vld [vmem:[%s4] sm:$0x1]
    %v205 = vlaneseq
    %v206 = vshrl.u32 %v205, 7
    %v207 = vsub.s32 0, %v206
    %v208 = vrot.slane %v203, %v207
    %v226 = vunpack.c.l.b16 %v187
    %v227 = vunpack.c.l.b16 %v188
    %v228 = vunpack.c.l.b16 %v189
    %v229 = vunpack.c.l.b16 %v190
    %v230 = vunpack.c.l.b16 %v191
    %v231 = vunpack.c.l.b16 %v192
    %v232 = vunpack.c.l.b16 %v193
    %v233 = vunpack.c.l.b16 %v194
    %v234 = vunpack.c.l.b16 %v195
    %v235 = vunpack.c.l.b16 %v196
    %v236 = vunpack.c.l.b16 %v197
    %v237 = vunpack.c.l.b16 %v198
    %v238 = vunpack.c.l.b16 %v199
    %v239 = vunpack.c.l.b16 %v200
    %v240 = vunpack.c.l.b16 %v201
    %v241 = vunpack.c.l.b16 %v202
    %v242 = vpack.c.b16 %v227, %v226
    %v243 = vpack.c.b16 %v229, %v228
    %v244 = vpack.c.b16 %v231, %v230
    %v245 = vpack.c.b16 %v233, %v232
    %v246 = vpack.c.b16 %v235, %v234
    %v247 = vpack.c.b16 %v237, %v236
    %v248 = vpack.c.b16 %v239, %v238
    %v249 = vpack.c.b16 %v241, %v240
    %258 = vmatprep.subr.bf16.mxu0 0
    %259 = vmatpush1.bf16.msra.mxu0 %v242
    %260 = vmatprep.subr.bf16.mxu0 0
    %261 = vmatpush1.bf16.msra.mxu0 %v243
    %262 = vmatprep.subr.bf16.mxu0 0
    %263 = vmatpush1.bf16.msra.mxu0 %v244
    %264 = vmatprep.subr.bf16.mxu0 0
    %265 = vmatpush1.bf16.msra.mxu0 %v245
    %266 = vmatprep.subr.bf16.mxu0 0
    %267 = vmatpush1.bf16.msra.mxu0 %v246
    %268 = vmatprep.subr.bf16.mxu0 0
    %269 = vmatpush1.bf16.msra.mxu0 %v247
    %270 = vmatprep.subr.bf16.mxu0 0
    %271 = vmatpush1.bf16.msra.mxu0 %v248
    %272 = vmatprep.subr.bf16.mxu0 0
    %273 = vmatpush1.bf16.msra.mxu0 %v249
    %274 = vmatprep.subr.bf16.mxu0 0
    %275 = vmatpush1.bf16.msra.mxu0 0
    %276 = vmatprep.subr.bf16.mxu0 0
    %277 = vmatpush1.bf16.msra.mxu0 0
    %278 = vmatprep.subr.bf16.mxu0 0
    %279 = vmatpush1.bf16.msra.mxu0 0
    %280 = vmatprep.subr.bf16.mxu0 0
    %281 = vmatpush1.bf16.msra.mxu0 0
    %282 = vmatprep.subr.bf16.mxu0 0
    %283 = vmatpush1.bf16.msra.mxu0 0
    %284 = vmatprep.subr.bf16.mxu0 0
    %285 = vmatpush1.bf16.msra.mxu0 0
    %286 = vmatprep.subr.bf16.mxu0 0
    %287 = vmatpush1.bf16.msra.mxu0 0
    %288 = vmatprep.subr.bf16.mxu0 0
    %289 = vmatpush1.bf16.msra.mxu0 0
    %290 = vmatprep.mubr.bf16.mxu0 0
    %291 = vmatmul.mubr.bf16.gmra.mrb[0].mxu0 %v186
    %v292 = vpop.f32.mrb[0].mxu0
    %v293 = vadd.f32 %v208, %v292
    %v294 = vpop.f32.mrb[0].mxu0
    %v295 = vpop.f32.mrb[0].mxu0
    %v296 = vadd.f32 %v208, %v295
    %v297 = vpop.f32.mrb[0].mxu0
    %298 = vdwg.mxu0
    %v299 = vpack.c.bf16 %v296, %v293
    %v300 = vtanh.bf16.pop %v299
    %v301 = vld [vmem:[#allocation6] sm:$0xf]
    %v302 = vld [vmem:[#allocation6 + $0x4] sm:$0xf]
    %v303 = vld [vmem:[#allocation6 + $0x8] sm:$0xf]
    %v304 = vld [vmem:[#allocation6 + $0xc] sm:$0xf]
    %v305 = vld [vmem:[#allocation6 + $0x10] sm:$0xf]
    %v306 = vld [vmem:[#allocation6 + $0x14] sm:$0xf]
    %v307 = vld [vmem:[#allocation6 + $0x18] sm:$0xf]
    %v308 = vld [vmem:[#allocation6 + $0x1c] sm:$0xf]
    %v309 = vld [vmem:[#allocation6 + $0x20] sm:$0xf]
    %v310 = vld [vmem:[#allocation6 + $0x24] sm:$0xf]
    %v311 = vld [vmem:[#allocation6 + $0x28] sm:$0xf]
    %v312 = vld [vmem:[#allocation6 + $0x2c] sm:$0xf]
    %v313 = vld [vmem:[#allocation6 + $0x30] sm:$0xf]
    %v314 = vld [vmem:[#allocation6 + $0x34] sm:$0xf]
    %v315 = vld [vmem:[#allocation6 + $0x38] sm:$0xf]
    %v316 = vld [vmem:[#allocation6 + $0x3c] sm:$0xf]
    %v333 = vunpack.c.l.b16 %v301
    %v334 = vunpack.c.l.b16 %v302
    %v335 = vunpack.c.l.b16 %v303
    %v336 = vunpack.c.l.b16 %v304
    %v337 = vunpack.c.l.b16 %v305
    %v338 = vunpack.c.l.b16 %v306
    %v339 = vunpack.c.l.b16 %v307
    %v340 = vunpack.c.l.b16 %v308
    %v341 = vunpack.c.l.b16 %v309
    %v342 = vunpack.c.l.b16 %v310
    %v343 = vunpack.c.l.b16 %v311
    %v344 = vunpack.c.l.b16 %v312
    %v345 = vunpack.c.l.b16 %v313
    %v346 = vunpack.c.l.b16 %v314
    %v347 = vunpack.c.l.b16 %v315
    %v348 = vunpack.c.l.b16 %v316
    %v349 = vpack.c.b16 %v334, %v333
    %v350 = vpack.c.b16 %v336, %v335
    %v351 = vpack.c.b16 %v338, %v337
    %v352 = vpack.c.b16 %v340, %v339
    %v353 = vpack.c.b16 %v342, %v341
    %v354 = vpack.c.b16 %v344, %v343
    %v355 = vpack.c.b16 %v346, %v345
    %v356 = vpack.c.b16 %v348, %v347
    %365 = vmatprep.subr.bf16.mxu0 0
    %366 = vmatpush1.bf16.msra.mxu0 %v349
    %367 = vmatprep.subr.bf16.mxu0 0
    %368 = vmatpush1.bf16.msra.mxu0 %v350
    %369 = vmatprep.subr.bf16.mxu0 0
    %370 = vmatpush1.bf16.msra.mxu0 %v351
    %371 = vmatprep.subr.bf16.mxu0 0
    %372 = vmatpush1.bf16.msra.mxu0 %v352
    %373 = vmatprep.subr.bf16.mxu0 0
    %374 = vmatpush1.bf16.msra.mxu0 %v353
    %375 = vmatprep.subr.bf16.mxu0 0
    %376 = vmatpush1.bf16.msra.mxu0 %v354
    %377 = vmatprep.subr.bf16.mxu0 0
    %378 = vmatpush1.bf16.msra.mxu0 %v355
    %379 = vmatprep.subr.bf16.mxu0 0
    %380 = vmatpush1.bf16.msra.mxu0 %v356
    %381 = vmatprep.subr.bf16.mxu0 0
    %382 = vmatpush1.bf16.msra.mxu0 0
    %383 = vmatprep.subr.bf16.mxu0 0
    %384 = vmatpush1.bf16.msra.mxu0 0
    %385 = vmatprep.subr.bf16.mxu0 0
    %386 = vmatpush1.bf16.msra.mxu0 0
    %387 = vmatprep.subr.bf16.mxu0 0
    %388 = vmatpush1.bf16.msra.mxu0 0
    %389 = vmatprep.subr.bf16.mxu0 0
    %390 = vmatpush1.bf16.msra.mxu0 0
    %391 = vmatprep.subr.bf16.mxu0 0
    %392 = vmatpush1.bf16.msra.mxu0 0
    %393 = vmatprep.subr.bf16.mxu0 0
    %394 = vmatpush1.bf16.msra.mxu0 0
    %395 = vmatprep.subr.bf16.mxu0 0
    %396 = vmatpush1.bf16.msra.mxu0 0
    %397 = vmatprep.mubr.bf16.mxu0 0
    %398 = vmatmul.mubr.bf16.gmra.mrb[0].mxu0 %v300
    %v399 = vpop.f32.mrb[0].mxu0
    %v400 = vadd.f32 0.0, %v399
    %v401 = vpop.f32.mrb[0].mxu0
    %v402 = vpop.f32.mrb[0].mxu0
    %v403 = vadd.f32 0.0, %v402
    %v404 = vpop.f32.mrb[0].mxu0
    %405 = vdwg.mxu0
    %406 = vst [vmem:[%s6] sm:$0xff] %v400
    %407 = vst [vmem:[%s6 + $0x8] sm:$0xff] %v403
    // Predicated region
    $region38: #{_mlp_forward_impl.1} parent=1 // pred_check
      _
    $region39: #{_mlp_forward_impl.1} parent=1 // pred_check_branch
      %409 = sbr.rel (0) target = $region41
    $region40: #{_mlp_forward_impl.1} parent=1 // pred_region
      _
    $region41: #{_mlp_forward_impl.1} parent=1 // pred_fallthru
      _
    // Predicated region
    $region42: #{_mlp_forward_impl.1} parent=1 // pred_check
      _
    $region43: #{_mlp_forward_impl.1} parent=1 // pred_check_branch
      %411 = sbr.rel (0) target = $region45
    $region44: #{_mlp_forward_impl.1} parent=1 // pred_region
      _
    $region45: #{_mlp_forward_impl.1} parent=1 // pred_fallthru
      _
    %412 = vsyncpa [#allocation3], 1
    %413 = vsyncpa [#allocation5], 1

</llo_original>
